<compile_context>
chip_gen: v7x
topology: tpu7x:2x2x1
jax: 0.10.0
libtpu: 0.0.40
codegen_flags: <defaults>
</compile_context>

<pallas_src>
import numpy as np
import jax
import jax.numpy as jnp
from jax.experimental import pallas as pl
from jax.experimental.pallas import tpu as pltpu


# Keep per-step footprint well under v7x's 64 MiB physical VMEM.
_VMEM_LIMIT_BYTES = 48 * 1024 * 1024
_MAX_ROW_TILE = 512   # sublane-axis tile (multiple of 8)
_MAX_COL_TILE = 512   # lane-axis tile (multiple of 128)


def _tile(dim, max_tile):
    """Full extent when small (always legal); otherwise an aligned max tile."""
    return dim if dim <= max_tile else max_tile


# ----------------------------------------------------------------------------
# Pallas kernel 1: tiled matmul + bias  (fused relation + root transform)
# ----------------------------------------------------------------------------
def _matmul_bias_kernel(x_ref, w_ref, b_ref, out_ref):
    # x_ref: (tm, F_in)  w_ref: (F_in, tc)  b_ref: (1, tc)  out_ref: (tm, tc)
    out_ref[...] = (
        jnp.dot(x_ref[...], w_ref[...], preferred_element_type=jnp.float32)
        + b_ref[...]
    )


def matmul_bias(x, w, b):
    """x: (N, F_in), w: (F_in, C), b: (1, C) -> (N, C); tiled over N and C."""
    N, F_in = x.shape
    C = w.shape[1]
    tm = _tile(N, _MAX_ROW_TILE)
    tc = _tile(C, _MAX_COL_TILE)
    grid = (pl.cdiv(N, tm), pl.cdiv(C, tc))
    return pl.pallas_call(
        _matmul_bias_kernel,
        out_shape=jax.ShapeDtypeStruct((N, C), jnp.float32),
        grid=grid,
        in_specs=[
            pl.BlockSpec((tm, F_in), lambda i, j: (i, 0)),
            pl.BlockSpec((F_in, tc), lambda i, j: (0, j)),
            pl.BlockSpec((1, tc), lambda i, j: (0, j)),
        ],
        out_specs=pl.BlockSpec((tm, tc), lambda i, j: (i, j)),
        compiler_params=pltpu.CompilerParams(
            dimension_semantics=("parallel", "parallel"),
            vmem_limit_bytes=_VMEM_LIMIT_BYTES,
        ),
        cost_estimate=pl.CostEstimate(
            flops=2 * N * F_in * C,
            transcendentals=0,
            bytes_accessed=4 * (N * F_in + F_in * C + C + N * C),
        ),
    )(x, w, b)


# ----------------------------------------------------------------------------
# Pallas kernel 2: decagon bilinear-diagonal decoder
#   score[o, e] = sigmoid( x1[e] @ diag(D[o]) @ R @ diag(D[o]) @ x2[e]^T )
# ----------------------------------------------------------------------------
def _decoder_kernel(x1t_ref, x2t_ref, mt_ref, out_ref):
    # x1t/x2t: (H, te)  mt: (O, H, H) with mt[o] = M_o^T  out: (O, te)
    a = x1t_ref[...]
    b = x2t_ref[...]
    num_rel = out_ref.shape[0]
    # TODO(synk): for large relation counts move `o` onto the grid (or a
    # fori_loop) instead of a static unroll.
    for o in range(num_rel):
        # (H,H) @ (H,te): lane-dense MXU matmul (E on the lane axis).
        u = jnp.dot(mt_ref[o], a, preferred_element_type=jnp.float32)
        s = jnp.sum(u * b, axis=0, keepdims=True)          # (1, te) sublane reduce
        out_ref[o : o + 1, :] = jax.nn.sigmoid(s)          # lane-dense row store


def decagon_decoder(x1, x2, D, R):
    """x1, x2: (E, H); D: (O, H); R: (H, H) -> (E, O) sigmoid scores."""
    E, H = x1.shape
    O = D.shape[0]
    # M_o = diag(D[o]) @ R @ diag(D[o]); pass M_o^T so the kernel operates on
    # (H, E) operands, keeping E on the TPU lane axis for matmul and stores.
    M = D[:, :, None] * R[None, :, :] * D[:, None, :]       # (O, H, H), tiny
    Mt = jnp.swapaxes(M, 1, 2)
    x1t = x1.T                                               # (H, E)
    x2t = x2.T
    te = _tile(E, _MAX_COL_TILE)
    grid = (pl.cdiv(E, te),)
    out_oe = pl.pallas_call(
        _decoder_kernel,
        out_shape=jax.ShapeDtypeStruct((O, E), jnp.float32),
        grid=grid,
        in_specs=[
            pl.BlockSpec((H, te), lambda i: (0, i)),
            pl.BlockSpec((H, te), lambda i: (0, i)),
            pl.BlockSpec((O, H, H), lambda i: (0, 0, 0)),
        ],
        out_specs=pl.BlockSpec((O, te), lambda i: (0, i)),
        compiler_params=pltpu.CompilerParams(
            dimension_semantics=("parallel",),
            vmem_limit_bytes=_VMEM_LIMIT_BYTES,
        ),
        cost_estimate=pl.CostEstimate(
            flops=2 * O * E * H * H + 2 * O * E * H,
            transcendentals=O * E,
            bytes_accessed=4 * (2 * E * H + O * H * H + O * E),
        ),
    )(x1t, x2t, Mt)
    return out_oe.T   # matches torch: t(diagonal(rec1, dim1=1, dim2=2)) -> (E, O)


# ----------------------------------------------------------------------------
# RGCN layer (PyG-style basis decomposition) — dense math in Pallas,
# gather / segment-mean scatter in JAX
# ----------------------------------------------------------------------------
def rgcn_layer(h, src, dst, edge_type, params, num_nodes, num_rel):
    F_in = h.shape[1]
    H = params["root"].shape[1]
    hp = jax.lax.Precision.HIGHEST
    # W_r = sum_b comp[r, b] * basis[b]    (tiny; plain JAX glue)
    W = jnp.einsum("rb,bio->rio", params["comp"], params["basis"], precision=hp)
    # Fuse all relation matmuls + root transform onto the lane axis:
    #   W_all[f, r*H + h'] = W[r, f, h'],  W_all[f, R*H + h'] = root[f, h']
    W_flat = jnp.transpose(W, (1, 0, 2)).reshape(F_in, num_rel * H)
    W_all = jnp.concatenate([W_flat, params["root"]], axis=1)          # (F_in, R*H+H)
    b_all = jnp.concatenate(
        [jnp.zeros((1, num_rel * H), jnp.float32), params["bias"]], axis=1
    )
    out = matmul_bias(h, W_all, b_all)                                 # Pallas, (N, R*H+H)
    msgs = out[:, : num_rel * H].reshape(num_nodes, num_rel, H)        # (N, R, H)
    root = out[:, num_rel * H :]                                       # (N, H)

    # per-edge message gather + per-(node, relation) mean  (data-dependent; XLA)
    m = msgs[src, edge_type]                                           # (E, H)
    seg = dst * num_rel + edge_type
    sums = jax.ops.segment_sum(m, seg, num_segments=num_nodes * num_rel)
    sums = sums.reshape(num_nodes, num_rel, H)
    counts = jax.ops.segment_sum(
        jnp.ones(m.shape[0], jnp.float32), seg, num_segments=num_nodes * num_rel
    ).reshape(num_nodes, num_rel, 1)
    agg = jnp.sum(sums / jnp.maximum(counts, 1.0), axis=1)             # mean per relation
    return agg + root


# ----------------------------------------------------------------------------
# Full DDI_decagon forward
# ----------------------------------------------------------------------------
def ddi_decagon_forward(x, src, dst, edge_type, tgt_src, tgt_dst, params):
    num_nodes = x.shape[0]
    num_rel = params["D"].shape[0]
    h = x
    for layer_params in params["gcn_layers"]:
        h = rgcn_layer(h, src, dst, edge_type, layer_params, num_nodes, num_rel)
        h = jax.nn.relu(h)
        # dropout(p=0.1): eval-mode identity
    x1 = h[tgt_src]
    x2 = h[tgt_dst]
    return decagon_decoder(x1, x2, params["D"], params["R"])


# ----------------------------------------------------------------------------
# Pure-JAX reference of the full forward (f32, HIGHEST matmul precision)
# ----------------------------------------------------------------------------
def forward_ref(x, src, dst, edge_type, tgt_src, tgt_dst, params):
    hp = jax.lax.Precision.HIGHEST
    num_nodes = x.shape[0]
    num_rel = params["D"].shape[0]
    h = x
    for lp in params["gcn_layers"]:
        W = jnp.einsum("rb,bio->rio", lp["comp"], lp["basis"], precision=hp)
        msgs_all = jnp.einsum("nf,rfh->rnh", h, W, precision=hp)       # (R, N, H)
        m = msgs_all[edge_type, src]
        seg = dst * num_rel + edge_type
        Hd = msgs_all.shape[-1]
        sums = jax.ops.segment_sum(m, seg, num_segments=num_nodes * num_rel)
        sums = sums.reshape(num_nodes, num_rel, Hd)
        counts = jax.ops.segment_sum(
            jnp.ones(m.shape[0], jnp.float32), seg, num_segments=num_nodes * num_rel
        ).reshape(num_nodes, num_rel, 1)
        agg = jnp.sum(sums / jnp.maximum(counts, 1.0), axis=1)
        root = jnp.dot(h, lp["root"], precision=hp) + lp["bias"]
        h = jax.nn.relu(agg + root)
    x1 = h[tgt_src]
    x2 = h[tgt_dst]
    rel = jax.vmap(jnp.diag)(params["D"])                   # diag_embed(D): (O, H, H)
    p1 = jnp.einsum("eh,ohk->oek", x1, rel, precision=hp)
    p2 = jnp.einsum("oek,kj->oej", p1, params["R"], precision=hp)
    p3 = jnp.einsum("oej,ojk->oek", p2, rel, precision=hp)
    rec1 = jnp.einsum("oek,fk->oef", p3, x2, precision=hp)
    diag = jnp.diagonal(rec1, axis1=1, axis2=2)             # (O, E)
    return jax.nn.sigmoid(diag.T)                           # (E, O)


# ----------------------------------------------------------------------------
# Deterministic parameter init + demo
# ----------------------------------------------------------------------------
def init_params(key, in_dim, hidden_dim, out_dim, num_bases, model_depth):
    keys = jax.random.split(key, 2 + 4 * model_depth)
    params = {
        "R": jax.random.normal(keys[0], (hidden_dim, hidden_dim), jnp.float32),
        "D": jax.random.normal(keys[1], (out_dim, hidden_dim), jnp.float32),
        "gcn_layers": [],
    }
    dims = [in_dim] + [hidden_dim] * model_depth
    for l in range(model_depth):
        k0, k1, k2, k3 = keys[2 + 4 * l : 6 + 4 * l]
        fin, fout = dims[l], dims[l + 1]
        params["gcn_layers"].append(
            {
                "basis": 0.1 * jax.random.normal(k0, (num_bases, fin, fout), jnp.float32),
                "comp": jax.random.normal(k1, (out_dim, num_bases), jnp.float32),
                "root": 0.1 * jax.random.normal(k2, (fin, fout), jnp.float32),
                "bias": 0.01 * jax.random.normal(k3, (1, fout), jnp.float32),
            }
        )
    return params


if __name__ == "__main__":
    # Small, module-consistent shapes
    N_NODES = 16
    IN_DIM = 16
    HIDDEN_DIM = 32
    OUT_DIM = 4          # number of relation types (size of D's first axis)
    NUM_BASES = 2
    MODEL_DEPTH = 2
    N_EDGES = 24
    N_TARGET_EDGES = 8

    key = jax.random.PRNGKey(0)
    k_x, k_ei, k_ea, k_te, k_p = jax.random.split(key, 5)

    x = jax.random.normal(k_x, (N_NODES, IN_DIM), jnp.float32)
    edge_index = jax.random.randint(k_ei, (2, N_EDGES), 0, N_NODES, jnp.int32)
    rel_of_edge = jax.random.randint(k_ea, (N_EDGES,), 0, OUT_DIM, jnp.int32)
    edge_attr = jax.nn.one_hot(rel_of_edge, OUT_DIM, dtype=jnp.float32)
    target_edge_index = jax.random.randint(k_te, (2, N_TARGET_EDGES), 0, N_NODES, jnp.int32)

    params = init_params(k_p, IN_DIM, HIDDEN_DIM, OUT_DIM, NUM_BASES, MODEL_DEPTH)

    # torch.nonzero(edge_attr): data-dependent shape -> resolved host-side with numpy
    ea_np = np.asarray(edge_attr)
    edges_np, etype_np = np.nonzero(ea_np)
    src = jnp.asarray(np.asarray(edge_index)[0, edges_np], jnp.int32)
    dst = jnp.asarray(np.asarray(edge_index)[1, edges_np], jnp.int32)
    edge_type = jnp.asarray(etype_np, jnp.int32)

    fwd = jax.jit(ddi_decagon_forward)
    out = fwd(x, src, dst, edge_type,
              target_edge_index[0], target_edge_index[1], params)
    out = jax.block_until_ready(out)
    assert out.shape == (N_TARGET_EDGES, OUT_DIM), out.shape

    ref = forward_ref(x, src, dst, edge_type,
                      target_edge_index[0], target_edge_index[1], params)
    np.testing.assert_allclose(np.asarray(out), np.asarray(ref), rtol=2e-4, atol=2e-5)

    print("KERNEL_OK")
</pallas_src>

<mosaic_0001>
module attributes {stable_mosaic.version = 11 : i64} {
  func.func @_matmul_bias_kernel(%arg0: i32, %arg1: i32, %arg2: memref<16x16xf32, #tpu.memory_space<vmem>>, %arg3: memref<16x160xf32, #tpu.memory_space<vmem>>, %arg4: memref<1x160xf32, #tpu.memory_space<vmem>>, %arg5: memref<16x160xf32, #tpu.memory_space<vmem>>) attributes {dimension_semantics = [#tpu.dimension_semantics<parallel>, #tpu.dimension_semantics<parallel>], iteration_bounds = array<i64: 1, 1>, scalar_prefetch = 0 : i64, scratch_operands = 0 : i64, tpu.core_type = #tpu.core_type<tc>, window_params = [{transform_indices = @transform_0, window_bounds = array<i64: 16, 16>}, {transform_indices = @transform_1, window_bounds = array<i64: 16, 160>}, {transform_indices = @transform_2, window_bounds = array<i64: 1, 160>}, {transform_indices = @transform_3, window_bounds = array<i64: 16, 160>}]} {
    %c0 = arith.constant 0 : index
    %c0_0 = arith.constant 0 : index
    %0 = vector.load %arg2[%c0, %c0_0] : memref<16x16xf32, #tpu.memory_space<vmem>>, vector<16x16xf32>
    %c0_1 = arith.constant 0 : index
    %c0_2 = arith.constant 0 : index
    %1 = vector.load %arg3[%c0_1, %c0_2] : memref<16x160xf32, #tpu.memory_space<vmem>>, vector<16x160xf32>
    %cst = arith.constant dense<0.000000e+00> : vector<16x160xf32>
    %2 = tpu.matmul %0, %1, %cst {dimension_numbers = #tpu.dot_dimension_numbers<[1], [0], [0], [1], [0, 0, 1, 1], [], []>} : vector<16x16xf32>, vector<16x160xf32>, vector<16x160xf32> -> vector<16x160xf32>
    %c0_3 = arith.constant 0 : index
    %c0_4 = arith.constant 0 : index
    %3 = vector.load %arg4[%c0_3, %c0_4] : memref<1x160xf32, #tpu.memory_space<vmem>>, vector<1x160xf32>
    %4 = vector.broadcast %3 : vector<1x160xf32> to vector<16x160xf32>
    %5 = arith.addf %2, %4 : vector<16x160xf32>
    %c0_5 = arith.constant 0 : index
    %c0_6 = arith.constant 0 : index
    %6 = vector.load %arg5[%c0_5, %c0_6] : memref<16x160xf32, #tpu.memory_space<vmem>>, vector<16x160xf32>
    tpu.vector_store %arg5[%c0_5, %c0_6], %5 {strides = array<i32>} : memref<16x160xf32, #tpu.memory_space<vmem>>, vector<16x160xf32>,
    return
  }
  func.func @transform_0(%arg0: i32, %arg1: i32) -> (i32, i32) {
    %c0_i32 = arith.constant 0 : i32
    %c0_i32_0 = arith.constant 0 : i32
    return %arg0, %c0_i32 : i32, i32
  }
  func.func @transform_1(%arg0: i32, %arg1: i32) -> (i32, i32) {
    %c0_i32 = arith.constant 0 : i32
    %c0_i32_0 = arith.constant 0 : i32
    return %c0_i32, %arg1 : i32, i32
  }
  func.func @transform_2(%arg0: i32, %arg1: i32) -> (i32, i32) {
    %c0_i32 = arith.constant 0 : i32
    %c0_i32_0 = arith.constant 0 : i32
    return %c0_i32, %arg1 : i32, i32
  }
  func.func @transform_3(%arg0: i32, %arg1: i32) -> (i32, i32) {
    %c0_i32 = arith.constant 0 : i32
    return %arg0, %arg1 : i32, i32
  }
}

module attributes {stable_mosaic.version = 11 : i64} {
  func.func @_matmul_bias_kernel(%arg0: i32, %arg1: i32, %arg2: memref<16x32xf32, #tpu.memory_space<vmem>>, %arg3: memref<32x160xf32, #tpu.memory_space<vmem>>, %arg4: memref<1x160xf32, #tpu.memory_space<vmem>>, %arg5: memref<16x160xf32, #tpu.memory_space<vmem>>) attributes {dimension_semantics = [#tpu.dimension_semantics<parallel>, #tpu.dimension_semantics<parallel>], iteration_bounds = array<i64: 1, 1>, scalar_prefetch = 0 : i64, scratch_operands = 0 : i64, tpu.core_type = #tpu.core_type<tc>, window_params = [{transform_indices = @transform_0, window_bounds = array<i64: 16, 32>}, {transform_indices = @transform_1, window_bounds = array<i64: 32, 160>}, {transform_indices = @transform_2, window_bounds = array<i64: 1, 160>}, {transform_indices = @transform_3, window_bounds = array<i64: 16, 160>}]} {
    %c0 = arith.constant 0 : index
    %c0_0 = arith.constant 0 : index
    %0 = vector.load %arg2[%c0, %c0_0] : memref<16x32xf32, #tpu.memory_space<vmem>>, vector<16x32xf32>
    %c0_1 = arith.constant 0 : index
    %c0_2 = arith.constant 0 : index
    %1 = vector.load %arg3[%c0_1, %c0_2] : memref<32x160xf32, #tpu.memory_space<vmem>>, vector<32x160xf32>
    %cst = arith.constant dense<0.000000e+00> : vector<16x160xf32>
    %2 = tpu.matmul %0, %1, %cst {dimension_numbers = #tpu.dot_dimension_numbers<[1], [0], [0], [1], [0, 0, 1, 1], [], []>} : vector<16x32xf32>, vector<32x160xf32>, vector<16x160xf32> -> vector<16x160xf32>
    %c0_3 = arith.constant 0 : index
    %c0_4 = arith.constant 0 : index
    %3 = vector.load %arg4[%c0_3, %c0_4] : memref<1x160xf32, #tpu.memory_space<vmem>>, vector<1x160xf32>
    %4 = vector.broadcast %3 : vector<1x160xf32> to vector<16x160xf32>
    %5 = arith.addf %2, %4 : vector<16x160xf32>
    %c0_5 = arith.constant 0 : index
    %c0_6 = arith.constant 0 : index
    %6 = vector.load %arg5[%c0_5, %c0_6] : memref<16x160xf32, #tpu.memory_space<vmem>>, vector<16x160xf32>
    tpu.vector_store %arg5[%c0_5, %c0_6], %5 {strides = array<i32>} : memref<16x160xf32, #tpu.memory_space<vmem>>, vector<16x160xf32>,
    return
  }
  func.func @transform_0(%arg0: i32, %arg1: i32) -> (i32, i32) {
    %c0_i32 = arith.constant 0 : i32
    %c0_i32_0 = arith.constant 0 : i32
    return %arg0, %c0_i32 : i32, i32
  }
  func.func @transform_1(%arg0: i32, %arg1: i32) -> (i32, i32) {
    %c0_i32 = arith.constant 0 : i32
    %c0_i32_0 = arith.constant 0 : i32
    return %c0_i32, %arg1 : i32, i32
  }
  func.func @transform_2(%arg0: i32, %arg1: i32) -> (i32, i32) {
    %c0_i32 = arith.constant 0 : i32
    %c0_i32_0 = arith.constant 0 : i32
    return %c0_i32, %arg1 : i32, i32
  }
  func.func @transform_3(%arg0: i32, %arg1: i32) -> (i32, i32) {
    %c0_i32 = arith.constant 0 : i32
    return %arg0, %arg1 : i32, i32
  }
}

module attributes {stable_mosaic.version = 11 : i64} {
  func.func @_decoder_kernel(%arg0: i32, %arg1: memref<32x8xf32, #tpu.memory_space<vmem>>, %arg2: memref<32x8xf32, #tpu.memory_space<vmem>>, %arg3: memref<4x32x32xf32, #tpu.memory_space<vmem>>, %arg4: memref<4x8xf32, #tpu.memory_space<vmem>>) attributes {dimension_semantics = [#tpu.dimension_semantics<parallel>], iteration_bounds = array<i64: 1>, scalar_prefetch = 0 : i64, scratch_operands = 0 : i64, tpu.core_type = #tpu.core_type<tc>, window_params = [{transform_indices = @transform_0, window_bounds = array<i64: 32, 8>}, {transform_indices = @transform_1, window_bounds = array<i64: 32, 8>}, {pipeline_mode = #tpu.pipeline_mode<synchronous>, transform_indices = @transform_2, window_bounds = array<i64: 4, 32, 32>}, {transform_indices = @transform_3, window_bounds = array<i64: 4, 8>}]} {
    %c0 = arith.constant 0 : index
    %c0_0 = arith.constant 0 : index
    %0 = vector.load %arg1[%c0, %c0_0] : memref<32x8xf32, #tpu.memory_space<vmem>>, vector<32x8xf32>
    %c0_1 = arith.constant 0 : index
    %c0_2 = arith.constant 0 : index
    %1 = vector.load %arg2[%c0_1, %c0_2] : memref<32x8xf32, #tpu.memory_space<vmem>>, vector<32x8xf32>
    %c0_3 = arith.constant 0 : index
    %c0_4 = arith.constant 0 : index
    %c0_5 = arith.constant 0 : index
    %2 = vector.load %arg3[%c0_3, %c0_4, %c0_5] : memref<4x32x32xf32, #tpu.memory_space<vmem>>, vector<1x32x32xf32>
    %3 = vector.shape_cast %2 : vector<1x32x32xf32> to vector<32x32xf32>
    %cst = arith.constant dense<0.000000e+00> : vector<32x8xf32>
    %4 = tpu.matmul %3, %0, %cst {dimension_numbers = #tpu.dot_dimension_numbers<[1], [0], [0], [1], [0, 0, 1, 1], [], []>} : vector<32x32xf32>, vector<32x8xf32>, vector<32x8xf32> -> vector<32x8xf32>
    %5 = arith.mulf %4, %1 : vector<32x8xf32>
    %cst_6 = arith.constant dense<0.000000e+00> : vector<8xf32>
    %6 = vector.multi_reduction <add>, %5, %cst_6 [0] : vector<32x8xf32> to vector<8xf32>
    %7 = vector.shape_cast %6 : vector<8xf32> to vector<1x8xf32>
    %8 = arith.negf %7 : vector<1x8xf32>
    %9 = math.exp %8 : vector<1x8xf32>
    %cst_7 = arith.constant 1.000000e+00 : f32
    %10 = vector.broadcast %cst_7 : f32 to vector<1x8xf32>
    %11 = arith.addf %10, %9 : vector<1x8xf32>
    %12 = arith.divf %10, %11 : vector<1x8xf32>
    %c0_8 = arith.constant 0 : index
    %c0_9 = arith.constant 0 : index
    %13 = vector.load %arg4[%c0_8, %c0_9] : memref<4x8xf32, #tpu.memory_space<vmem>>, vector<1x8xf32>
    tpu.vector_store %arg4[%c0_8, %c0_9], %12 {strides = array<i32>} : memref<4x8xf32, #tpu.memory_space<vmem>>, vector<1x8xf32>,
    %c1 = arith.constant 1 : index
    %c0_10 = arith.constant 0 : index
    %c0_11 = arith.constant 0 : index
    %14 = vector.load %arg3[%c1, %c0_10, %c0_11] : memref<4x32x32xf32, #tpu.memory_space<vmem>>, vector<1x32x32xf32>
    %15 = vector.shape_cast %14 : vector<1x32x32xf32> to vector<32x32xf32>
    %cst_12 = arith.constant dense<0.000000e+00> : vector<32x8xf32>
    %16 = tpu.matmul %15, %0, %cst_12 {dimension_numbers = #tpu.dot_dimension_numbers<[1], [0], [0], [1], [0, 0, 1, 1], [], []>} : vector<32x32xf32>, vector<32x8xf32>, vector<32x8xf32> -> vector<32x8xf32>
    %17 = arith.mulf %16, %1 : vector<32x8xf32>
    %cst_13 = arith.constant dense<0.000000e+00> : vector<8xf32>
    %18 = vector.multi_reduction <add>, %17, %cst_13 [0] : vector<32x8xf32> to vector<8xf32>
    %19 = vector.shape_cast %18 : vector<8xf32> to vector<1x8xf32>
    %20 = arith.negf %19 : vector<1x8xf32>
    %21 = math.exp %20 : vector<1x8xf32>
    %cst_14 = arith.constant 1.000000e+00 : f32
    %22 = vector.broadcast %cst_14 : f32 to vector<1x8xf32>
    %23 = arith.addf %22, %21 : vector<1x8xf32>
    %24 = arith.divf %22, %23 : vector<1x8xf32>
    %c1_15 = arith.constant 1 : index
    %c0_16 = arith.constant 0 : index
    %25 = vector.load %arg4[%c1_15, %c0_16] : memref<4x8xf32, #tpu.memory_space<vmem>>, vector<1x8xf32>
    tpu.vector_store %arg4[%c1_15, %c0_16], %24 {strides = array<i32>} : memref<4x8xf32, #tpu.memory_space<vmem>>, vector<1x8xf32>,
    %c2 = arith.constant 2 : index
    %c0_17 = arith.constant 0 : index
    %c0_18 = arith.constant 0 : index
    %26 = vector.load %arg3[%c2, %c0_17, %c0_18] : memref<4x32x32xf32, #tpu.memory_space<vmem>>, vector<1x32x32xf32>
    %27 = vector.shape_cast %26 : vector<1x32x32xf32> to vector<32x32xf32>
    %cst_19 = arith.constant dense<0.000000e+00> : vector<32x8xf32>
    %28 = tpu.matmul %27, %0, %cst_19 {dimension_numbers = #tpu.dot_dimension_numbers<[1], [0], [0], [1], [0, 0, 1, 1], [], []>} : vector<32x32xf32>, vector<32x8xf32>, vector<32x8xf32> -> vector<32x8xf32>
    %29 = arith.mulf %28, %1 : vector<32x8xf32>
    %cst_20 = arith.constant dense<0.000000e+00> : vector<8xf32>
    %30 = vector.multi_reduction <add>, %29, %cst_20 [0] : vector<32x8xf32> to vector<8xf32>
    %31 = vector.shape_cast %30 : vector<8xf32> to vector<1x8xf32>
    %32 = arith.negf %31 : vector<1x8xf32>
    %33 = math.exp %32 : vector<1x8xf32>
    %cst_21 = arith.constant 1.000000e+00 : f32
    %34 = vector.broadcast %cst_21 : f32 to vector<1x8xf32>
    %35 = arith.addf %34, %33 : vector<1x8xf32>
    %36 = arith.divf %34, %35 : vector<1x8xf32>
    %c2_22 = arith.constant 2 : index
    %c0_23 = arith.constant 0 : index
    %37 = vector.load %arg4[%c2_22, %c0_23] : memref<4x8xf32, #tpu.memory_space<vmem>>, vector<1x8xf32>
    tpu.vector_store %arg4[%c2_22, %c0_23], %36 {strides = array<i32>} : memref<4x8xf32, #tpu.memory_space<vmem>>, vector<1x8xf32>,
    %c3 = arith.constant 3 : index
    %c0_24 = arith.constant 0 : index
    %c0_25 = arith.constant 0 : index
    %38 = vector.load %arg3[%c3, %c0_24, %c0_25] : memref<4x32x32xf32, #tpu.memory_space<vmem>>, vector<1x32x32xf32>
    %39 = vector.shape_cast %38 : vector<1x32x32xf32> to vector<32x32xf32>
    %cst_26 = arith.constant dense<0.000000e+00> : vector<32x8xf32>
    %40 = tpu.matmul %39, %0, %cst_26 {dimension_numbers = #tpu.dot_dimension_numbers<[1], [0], [0], [1], [0, 0, 1, 1], [], []>} : vector<32x32xf32>, vector<32x8xf32>, vector<32x8xf32> -> vector<32x8xf32>
    %41 = arith.mulf %40, %1 : vector<32x8xf32>
    %cst_27 = arith.constant dense<0.000000e+00> : vector<8xf32>
    %42 = vector.multi_reduction <add>, %41, %cst_27 [0] : vector<32x8xf32> to vector<8xf32>
    %43 = vector.shape_cast %42 : vector<8xf32> to vector<1x8xf32>
    %44 = arith.negf %43 : vector<1x8xf32>
    %45 = math.exp %44 : vector<1x8xf32>
    %cst_28 = arith.constant 1.000000e+00 : f32
    %46 = vector.broadcast %cst_28 : f32 to vector<1x8xf32>
    %47 = arith.addf %46, %45 : vector<1x8xf32>
    %48 = arith.divf %46, %47 : vector<1x8xf32>
    %c3_29 = arith.constant 3 : index
    %c0_30 = arith.constant 0 : index
    %49 = vector.load %arg4[%c3_29, %c0_30] : memref<4x8xf32, #tpu.memory_space<vmem>>, vector<1x8xf32>
    tpu.vector_store %arg4[%c3_29, %c0_30], %48 {strides = array<i32>} : memref<4x8xf32, #tpu.memory_space<vmem>>, vector<1x8xf32>,
    return
  }
  func.func @transform_0(%arg0: i32) -> (i32, i32) {
    %c0_i32 = arith.constant 0 : i32
    %c0_i32_0 = arith.constant 0 : i32
    return %c0_i32, %arg0 : i32, i32
  }
  func.func @transform_1(%arg0: i32) -> (i32, i32) {
    %c0_i32 = arith.constant 0 : i32
    %c0_i32_0 = arith.constant 0 : i32
    return %c0_i32, %arg0 : i32, i32
  }
  func.func @transform_2(%arg0: i32) -> (i32, i32, i32) {
    %c0_i32 = arith.constant 0 : i32
    %c0_i32_0 = arith.constant 0 : i32
    %c0_i32_1 = arith.constant 0 : i32
    %c0_i32_2 = arith.constant 0 : i32
    return %c0_i32, %c0_i32_0, %c0_i32_1 : i32, i32, i32
  }
  func.func @transform_3(%arg0: i32) -> (i32, i32) {
    %c0_i32 = arith.constant 0 : i32
    %c0_i32_0 = arith.constant 0 : i32
    return %c0_i32, %arg0 : i32, i32
  }
}

</mosaic_0001>

<llo_original>
// kernel: ddi_decagon_forward.3
$region0: #{ddi_decagon_forward.3}
  #allocation0 [shape = 'u32[]', space=smem, size = 0x4, offset = 0x4, fixed_abs, tag = 'smem constant byte address 0x4 - core index']
  #allocation1 [shape = 'u32[144,128]{1,0:T(1,128)}', space=vmem, size = 0x12000, scoped, tag = 'internal scratch']
  %s0 = inlined_call_operand.vmem [shape: f32[16,16], index: 0, kind: input, shape index: {}]
  %s1 = inlined_call_operand.vmem [shape: f32[16,160], index: 1, kind: input, shape index: {}]
  %s2 = inlined_call_operand.vmem [shape: f32[1,160], index: 2, kind: input, shape index: {}]
  %s3 = inlined_call_operand.vmem [shape: f32[16,160], index: 3, kind: output, shape index: {}]
  %s4 = sld [smem:[#allocation0]]
  $region22: #{ddi_decagon_forward.3} parent=0
    _
  %s6 = ssub.s32 1, %s4
  %s7 = scalar_select 0, %s6, %s4
  // Predicated region
  $region2: #{ddi_decagon_forward.3} parent=0 // pred_check
    _
  $region3: #{ddi_decagon_forward.3} parent=0 // pred_check_branch
    %9 = sbr.rel (0) target = $region5
  $region4: #{ddi_decagon_forward.3} parent=0 // pred_region
    _
  $region5: #{ddi_decagon_forward.3} parent=0 // pred_fallthru
    _
  // Predicated region
  $region6: #{ddi_decagon_forward.3} parent=0 // pred_check
    _
  $region7: #{ddi_decagon_forward.3} parent=0 // pred_check_branch
    %11 = sbr.rel (0) target = $region9
  $region8: #{ddi_decagon_forward.3} parent=0 // pred_region
    _
  $region9: #{ddi_decagon_forward.3} parent=0 // pred_fallthru
    _
  // Predicated region
  $region10: #{ddi_decagon_forward.3} parent=0 // pred_check
    _
  $region11: #{ddi_decagon_forward.3} parent=0 // pred_check_branch
    %13 = sbr.rel (0) target = $region13
  $region12: #{ddi_decagon_forward.3} parent=0 // pred_region
    _
  $region13: #{ddi_decagon_forward.3} parent=0 // pred_fallthru
    _
  %v14 = vld [vmem:[%s0] sm:$0xff]
  %v15 = vld [vmem:[%s0 + $0x8] sm:$0xff]
  %v16 = vld [vmem:[%s1] sm:$0xff]
  %v17 = vld [vmem:[%s1 + $0x8] sm:$0xff]
  %v18 = vld [vmem:[%s1 + $0x10] sm:$0xff]
  %v19 = vld [vmem:[%s1 + $0x18] sm:$0xff]
  %v20 = vld [vmem:[%s2] sm:$0x3]
  %v22 = vlaneseq
  %v23 = vshrl.u32 %v22, 7
  %v24 = vsub.s32 0, %v23
  %v25 = vrot.slane %v20, %v24
  %v26 = vlaneseq
  %v27 = vshrl.u32 %v26, 7
  %v28 = vsub.s32 1, %v27
  %v29 = vrot.slane %v20, %v28
  %vm32 = vcmask 130048
  %v34 = vsel %vm32, %v14, 0
  %v37 = vsel %vm32, %v15, 0
  %39 = vmatprep.subr.mxu0 %v17
  %40 = vmatpush1.msra.mxu0 %v16
  %41 = vmatprep.subr.mxu0 %v19
  %42 = vmatpush1.msra.mxu0 %v18
  %43 = vmatprep.subr.mxu0 0.0
  %44 = vmatpush1.msra.mxu0 0.0
  %45 = vmatprep.subr.mxu0 0.0
  %46 = vmatpush1.msra.mxu0 0.0
  %47 = vmatprep.subr.mxu0 0.0
  %48 = vmatpush1.msra.mxu0 0.0
  %49 = vmatprep.subr.mxu0 0.0
  %50 = vmatpush1.msra.mxu0 0.0
  %51 = vmatprep.subr.mxu0 0.0
  %52 = vmatpush1.msra.mxu0 0.0
  %53 = vmatprep.subr.mxu0 0.0
  %54 = vmatpush1.msra.mxu0 0.0
  %55 = vmatprep.subr.mxu0 0.0
  %56 = vmatpush1.msra.mxu0 0.0
  %57 = vmatprep.subr.mxu0 0.0
  %58 = vmatpush1.msra.mxu0 0.0
  %59 = vmatprep.subr.mxu0 0.0
  %60 = vmatpush1.msra.mxu0 0.0
  %61 = vmatprep.subr.mxu0 0.0
  %62 = vmatpush1.msra.mxu0 0.0
  %63 = vmatprep.subr.mxu0 0.0
  %64 = vmatpush1.msra.mxu0 0.0
  %65 = vmatprep.subr.mxu0 0.0
  %66 = vmatpush1.msra.mxu0 0.0
  %67 = vmatprep.subr.mxu0 0.0
  %68 = vmatpush1.msra.mxu0 0.0
  %69 = vmatprep.subr.mxu0 0.0
  %70 = vmatpush1.msra.mxu0 0.0
  %71 = vmatprep.subr.mxu0 0.0
  %72 = vmatpush1.msra.mxu0 0.0
  %73 = vmatprep.subr.mxu0 0.0
  %74 = vmatpush1.msra.mxu0 0.0
  %75 = vmatprep.subr.mxu0 0.0
  %76 = vmatpush1.msra.mxu0 0.0
  %77 = vmatprep.subr.mxu0 0.0
  %78 = vmatpush1.msra.mxu0 0.0
  %79 = vmatprep.subr.mxu0 0.0
  %80 = vmatpush1.msra.mxu0 0.0
  %81 = vmatprep.subr.mxu0 0.0
  %82 = vmatpush1.msra.mxu0 0.0
  %83 = vmatprep.subr.mxu0 0.0
  %84 = vmatpush1.msra.mxu0 0.0
  %85 = vmatprep.subr.mxu0 0.0
  %86 = vmatpush1.msra.mxu0 0.0
  %87 = vmatprep.subr.mxu0 0.0
  %88 = vmatpush1.msra.mxu0 0.0
  %89 = vmatprep.subr.mxu0 0.0
  %90 = vmatpush1.msra.mxu0 0.0
  %91 = vmatprep.subr.mxu0 0.0
  %92 = vmatpush1.msra.mxu0 0.0
  %93 = vmatprep.subr.mxu0 0.0
  %94 = vmatpush1.msra.mxu0 0.0
  %95 = vmatprep.subr.mxu0 0.0
  %96 = vmatpush1.msra.mxu0 0.0
  %97 = vmatprep.subr.mxu0 0.0
  %98 = vmatpush1.msra.mxu0 0.0
  %99 = vmatprep.subr.mxu0 0.0
  %100 = vmatpush1.msra.mxu0 0.0
  %101 = vmatprep.subr.mxu0 0.0
  %102 = vmatpush1.msra.mxu0 0.0
  %103 = vmatprep.mubr.f32.mxu0 0.0
  %104 = vmatmul.mubr.f32.gmra.mrb[0].mxu0 %v34
  %v105 = vpop.f32.mrb[0].mxu0
  %v106 = vadd.f32 %v25, %v105
  %v107 = vpop.f32.mrb[0].mxu0
  %v108 = vadd.f32 %v29, %v107
  %109 = vmatprep.mubr.f32.mxu0 0.0
  %110 = vmatmul.mubr.f32.gmra.mrb[0].mxu0 %v37
  %v111 = vpop.f32.mrb[0].mxu0
  %v112 = vadd.f32 %v25, %v111
  %v113 = vpop.f32.mrb[0].mxu0
  %v114 = vadd.f32 %v29, %v113
  %115 = vdwg.mxu0
  %116 = vst [vmem:[%s3] sm:$0xff] %v106
  %vm117 = vcmask 261120
  %118 = vst.msk [vmem:[%s3 + $0x8] sm:$0xff] %vm117, %v108
  %119 = vst [vmem:[%s3 + $0x10] sm:$0xff] %v112
  %120 = vst.msk [vmem:[%s3 + $0x18] sm:$0xff] %vm117, %v114
  // Predicated region
  $region14: #{ddi_decagon_forward.3} parent=0 // pred_check
    _
  $region15: #{ddi_decagon_forward.3} parent=0 // pred_check_branch
    %122 = sbr.rel (0) target = $region17
  $region16: #{ddi_decagon_forward.3} parent=0 // pred_region
    _
  $region17: #{ddi_decagon_forward.3} parent=0 // pred_fallthru
    _
  // Predicated region
  $region18: #{ddi_decagon_forward.3} parent=0 // pred_check
    _
  $region19: #{ddi_decagon_forward.3} parent=0 // pred_check_branch
    %124 = sbr.rel (0) target = $region21
  $region20: #{ddi_decagon_forward.3} parent=0 // pred_region
    _
  $region21: #{ddi_decagon_forward.3} parent=0 // pred_fallthru
    _

// kernel: ddi_decagon_forward.4
$region0: #{ddi_decagon_forward.4}
  #allocation0 [shape = 'u32[]', space=smem, size = 0x4, offset = 0x4, fixed_abs, tag = 'smem constant byte address 0x4 - core index']
  #allocation1 [shape = 'u32[144,128]{1,0:T(1,128)}', space=vmem, size = 0x12000, scoped, tag = 'internal scratch']
  %s0 = inlined_call_operand.vmem [shape: f32[16,32], index: 0, kind: input, shape index: {}]
  %s1 = inlined_call_operand.vmem [shape: f32[32,160], index: 1, kind: input, shape index: {}]
  %s2 = inlined_call_operand.vmem [shape: f32[1,160], index: 2, kind: input, shape index: {}]
  %s3 = inlined_call_operand.vmem [shape: f32[16,160], index: 3, kind: output, shape index: {}]
  %s4 = sld [smem:[#allocation0]]
  $region22: #{ddi_decagon_forward.4} parent=0
    _
  %s6 = ssub.s32 1, %s4
  %s7 = scalar_select 0, %s6, %s4
  // Predicated region
  $region2: #{ddi_decagon_forward.4} parent=0 // pred_check
    _
  $region3: #{ddi_decagon_forward.4} parent=0 // pred_check_branch
    %9 = sbr.rel (0) target = $region5
  $region4: #{ddi_decagon_forward.4} parent=0 // pred_region
    _
  $region5: #{ddi_decagon_forward.4} parent=0 // pred_fallthru
    _
  // Predicated region
  $region6: #{ddi_decagon_forward.4} parent=0 // pred_check
    _
  $region7: #{ddi_decagon_forward.4} parent=0 // pred_check_branch
    %11 = sbr.rel (0) target = $region9
  $region8: #{ddi_decagon_forward.4} parent=0 // pred_region
    _
  $region9: #{ddi_decagon_forward.4} parent=0 // pred_fallthru
    _
  // Predicated region
  $region10: #{ddi_decagon_forward.4} parent=0 // pred_check
    _
  $region11: #{ddi_decagon_forward.4} parent=0 // pred_check_branch
    %13 = sbr.rel (0) target = $region13
  $region12: #{ddi_decagon_forward.4} parent=0 // pred_region
    _
  $region13: #{ddi_decagon_forward.4} parent=0 // pred_fallthru
    _
  %v14 = vld [vmem:[%s0] sm:$0xff]
  %v15 = vld [vmem:[%s0 + $0x8] sm:$0xff]
  %v16 = vld [vmem:[%s1] sm:$0xff]
  %v17 = vld [vmem:[%s1 + $0x8] sm:$0xff]
  %v18 = vld [vmem:[%s1 + $0x10] sm:$0xff]
  %v19 = vld [vmem:[%s1 + $0x18] sm:$0xff]
  %v20 = vld [vmem:[%s1 + $0x20] sm:$0xff]
  %v21 = vld [vmem:[%s1 + $0x28] sm:$0xff]
  %v22 = vld [vmem:[%s1 + $0x30] sm:$0xff]
  %v23 = vld [vmem:[%s1 + $0x38] sm:$0xff]
  %v24 = vld [vmem:[%s2] sm:$0x3]
  %v26 = vlaneseq
  %v27 = vshrl.u32 %v26, 7
  %v28 = vsub.s32 0, %v27
  %v29 = vrot.slane %v24, %v28
  %v30 = vlaneseq
  %v31 = vshrl.u32 %v30, 7
  %v32 = vsub.s32 1, %v31
  %v33 = vrot.slane %v24, %v32
  %vm36 = vcmask 261120
  %v38 = vsel %vm36, %v14, 0
  %v41 = vsel %vm36, %v15, 0
  %43 = vmatprep.subr.mxu0 %v17
  %44 = vmatpush1.msra.mxu0 %v16
  %45 = vmatprep.subr.mxu0 %v19
  %46 = vmatpush1.msra.mxu0 %v18
  %47 = vmatprep.subr.mxu0 %v21
  %48 = vmatpush1.msra.mxu0 %v20
  %49 = vmatprep.subr.mxu0 %v23
  %50 = vmatpush1.msra.mxu0 %v22
  %51 = vmatprep.subr.mxu0 0.0
  %52 = vmatpush1.msra.mxu0 0.0
  %53 = vmatprep.subr.mxu0 0.0
  %54 = vmatpush1.msra.mxu0 0.0
  %55 = vmatprep.subr.mxu0 0.0
  %56 = vmatpush1.msra.mxu0 0.0
  %57 = vmatprep.subr.mxu0 0.0
  %58 = vmatpush1.msra.mxu0 0.0
  %59 = vmatprep.subr.mxu0 0.0
  %60 = vmatpush1.msra.mxu0 0.0
  %61 = vmatprep.subr.mxu0 0.0
  %62 = vmatpush1.msra.mxu0 0.0
  %63 = vmatprep.subr.mxu0 0.0
  %64 = vmatpush1.msra.mxu0 0.0
  %65 = vmatprep.subr.mxu0 0.0
  %66 = vmatpush1.msra.mxu0 0.0
  %67 = vmatprep.subr.mxu0 0.0
  %68 = vmatpush1.msra.mxu0 0.0
  %69 = vmatprep.subr.mxu0 0.0
  %70 = vmatpush1.msra.mxu0 0.0
  %71 = vmatprep.subr.mxu0 0.0
  %72 = vmatpush1.msra.mxu0 0.0
  %73 = vmatprep.subr.mxu0 0.0
  %74 = vmatpush1.msra.mxu0 0.0
  %75 = vmatprep.subr.mxu0 0.0
  %76 = vmatpush1.msra.mxu0 0.0
  %77 = vmatprep.subr.mxu0 0.0
  %78 = vmatpush1.msra.mxu0 0.0
  %79 = vmatprep.subr.mxu0 0.0
  %80 = vmatpush1.msra.mxu0 0.0
  %81 = vmatprep.subr.mxu0 0.0
  %82 = vmatpush1.msra.mxu0 0.0
  %83 = vmatprep.subr.mxu0 0.0
  %84 = vmatpush1.msra.mxu0 0.0
  %85 = vmatprep.subr.mxu0 0.0
  %86 = vmatpush1.msra.mxu0 0.0
  %87 = vmatprep.subr.mxu0 0.0
  %88 = vmatpush1.msra.mxu0 0.0
  %89 = vmatprep.subr.mxu0 0.0
  %90 = vmatpush1.msra.mxu0 0.0
  %91 = vmatprep.subr.mxu0 0.0
  %92 = vmatpush1.msra.mxu0 0.0
  %93 = vmatprep.subr.mxu0 0.0
  %94 = vmatpush1.msra.mxu0 0.0
  %95 = vmatprep.subr.mxu0 0.0
  %96 = vmatpush1.msra.mxu0 0.0
  %97 = vmatprep.subr.mxu0 0.0
  %98 = vmatpush1.msra.mxu0 0.0
  %99 = vmatprep.subr.mxu0 0.0
  %100 = vmatpush1.msra.mxu0 0.0
  %101 = vmatprep.subr.mxu0 0.0
  %102 = vmatpush1.msra.mxu0 0.0
  %103 = vmatprep.subr.mxu0 0.0
  %104 = vmatpush1.msra.mxu0 0.0
  %105 = vmatprep.subr.mxu0 0.0
  %106 = vmatpush1.msra.mxu0 0.0
  %107 = vmatprep.mubr.f32.mxu0 0.0
  %108 = vmatmul.mubr.f32.gmra.mrb[0].mxu0 %v38
  %v109 = vpop.f32.mrb[0].mxu0
  %v110 = vadd.f32 %v29, %v109
  %v111 = vpop.f32.mrb[0].mxu0
  %v112 = vadd.f32 %v33, %v111
  %113 = vmatprep.mubr.f32.mxu0 0.0
  %114 = vmatmul.mubr.f32.gmra.mrb[0].mxu0 %v41
  %v115 = vpop.f32.mrb[0].mxu0
  %v116 = vadd.f32 %v29, %v115
  %v117 = vpop.f32.mrb[0].mxu0
  %v118 = vadd.f32 %v33, %v117
  %119 = vdwg.mxu0
  %120 = vst [vmem:[%s3] sm:$0xff] %v110
  %121 = vst.msk [vmem:[%s3 + $0x8] sm:$0xff] %vm36, %v112
  %122 = vst [vmem:[%s3 + $0x10] sm:$0xff] %v116
  %123 = vst.msk [vmem:[%s3 + $0x18] sm:$0xff] %vm36, %v118
  // Predicated region
  $region14: #{ddi_decagon_forward.4} parent=0 // pred_check
    _
  $region15: #{ddi_decagon_forward.4} parent=0 // pred_check_branch
    %125 = sbr.rel (0) target = $region17
  $region16: #{ddi_decagon_forward.4} parent=0 // pred_region
    _
  $region17: #{ddi_decagon_forward.4} parent=0 // pred_fallthru
    _
  // Predicated region
  $region18: #{ddi_decagon_forward.4} parent=0 // pred_check
    _
  $region19: #{ddi_decagon_forward.4} parent=0 // pred_check_branch
    %127 = sbr.rel (0) target = $region21
  $region20: #{ddi_decagon_forward.4} parent=0 // pred_region
    _
  $region21: #{ddi_decagon_forward.4} parent=0 // pred_fallthru
    _

// kernel: ddi_decagon_forward.5
$region0: #{ddi_decagon_forward.5}
  #allocation0 [shape = 'u32[]', space=smem, size = 0x4, offset = 0x4, fixed_abs, tag = 'smem constant byte address 0x4 - core index']
  #allocation1 [shape = 'u32[144,128]{1,0:T(1,128)}', space=vmem, size = 0x12000, scoped, tag = 'internal scratch']
  %s0 = inlined_call_operand.vmem [shape: f32[32,8], index: 0, kind: input, shape index: {}]
  %s1 = inlined_call_operand.vmem [shape: f32[32,8], index: 1, kind: input, shape index: {}]
  %s2 = inlined_call_operand.vmem [shape: f32[4,32,32], index: 2, kind: input, shape index: {}]
  %s3 = inlined_call_operand.hbm [shape: f32[4,8], index: 3, kind: output, shape index: {}]
  %s4 = sld [smem:[#allocation0]]
  $region22: #{ddi_decagon_forward.5} parent=0
    _
  %s6 = ssub.s32 1, %s4
  %s7 = scalar_select 0, %s6, %s4
  $region1: #{ddi_decagon_forward.5} parent=0
    #allocation2 [shape = 'u8[2048]{0}', space=vmem, size = 0x800, scoped, tag = 'output window, operand 0, single buffered']
    #allocation3 [shape = 's32[1]{0}', space=sflag, size = 0x4, scoped, tag = 'scoped memory for ddi_decagon_forward.5']
    %8 = vsyncpa [#allocation3], 0
    // Predicated region
    $region2: #{ddi_decagon_forward.5} parent=1 // pred_check
      _
    $region3: #{ddi_decagon_forward.5} parent=1 // pred_check_branch
      %10 = sbr.rel (0) target = $region5
    $region4: #{ddi_decagon_forward.5} parent=1 // pred_region
      _
    $region5: #{ddi_decagon_forward.5} parent=1 // pred_fallthru
      _
    // Predicated region
    $region6: #{ddi_decagon_forward.5} parent=1 // pred_check
      _
    $region7: #{ddi_decagon_forward.5} parent=1 // pred_check_branch
      %12 = sbr.rel (0) target = $region9
    $region8: #{ddi_decagon_forward.5} parent=1 // pred_region
      _
    $region9: #{ddi_decagon_forward.5} parent=1 // pred_fallthru
      _
    // Predicated region
    $region10: #{ddi_decagon_forward.5} parent=1 // pred_check
      _
    $region11: #{ddi_decagon_forward.5} parent=1 // pred_check_branch
      %14 = sbr.rel (0) target = $region13
    $region12: #{ddi_decagon_forward.5} parent=1 // pred_region
      _
    $region13: #{ddi_decagon_forward.5} parent=1 // pred_fallthru
      _
    %v15 = vld [vmem:[%s0] sm:$0xff]
    %v16 = vld [vmem:[%s0 + $0x8] sm:$0xff]
    %v17 = vld [vmem:[%s0 + $0x10] sm:$0xff]
    %v18 = vld [vmem:[%s0 + $0x18] sm:$0xff]
    %v19 = vld [vmem:[%s1] sm:$0xff]
    %v20 = vld [vmem:[%s1 + $0x8] sm:$0xff]
    %v21 = vld [vmem:[%s1 + $0x10] sm:$0xff]
    %v22 = vld [vmem:[%s1 + $0x18] sm:$0xff]
    %v23 = vld [vmem:[%s2] sm:$0xff]
    %v24 = vld [vmem:[%s2 + $0x8] sm:$0xff]
    %v25 = vld [vmem:[%s2 + $0x10] sm:$0xff]
    %v26 = vld [vmem:[%s2 + $0x18] sm:$0xff]
    %vm27 = vcmask 261120
    %v29 = vsel %vm27, %v23, 0
    %v32 = vsel %vm27, %v24, 0
    %v35 = vsel %vm27, %v25, 0
    %v38 = vsel %vm27, %v26, 0
    %40 = vmatprep.subr.mxu0 0.0
    %41 = vmatpush1.msra.mxu0 %v15
    %42 = vmatprep.subr.mxu0 0.0
    %43 = vmatpush1.msra.mxu0 %v16
    %44 = vmatprep.subr.mxu0 0.0
    %45 = vmatpush1.msra.mxu0 %v17
    %46 = vmatprep.subr.mxu0 0.0
    %47 = vmatpush1.msra.mxu0 %v18
    %48 = vmatprep.subr.mxu0 0.0
    %49 = vmatpush1.msra.mxu0 0.0
    %50 = vmatprep.subr.mxu0 0.0
    %51 = vmatpush1.msra.mxu0 0.0
    %52 = vmatprep.subr.mxu0 0.0
    %53 = vmatpush1.msra.mxu0 0.0
    %54 = vmatprep.subr.mxu0 0.0
    %55 = vmatpush1.msra.mxu0 0.0
    %56 = vmatprep.subr.mxu0 0.0
    %57 = vmatpush1.msra.mxu0 0.0
    %58 = vmatprep.subr.mxu0 0.0
    %59 = vmatpush1.msra.mxu0 0.0
    %60 = vmatprep.subr.mxu0 0.0
    %61 = vmatpush1.msra.mxu0 0.0
    %62 = vmatprep.subr.mxu0 0.0
    %63 = vmatpush1.msra.mxu0 0.0
    %64 = vmatprep.subr.mxu0 0.0
    %65 = vmatpush1.msra.mxu0 0.0
    %66 = vmatprep.subr.mxu0 0.0
    %67 = vmatpush1.msra.mxu0 0.0
    %68 = vmatprep.subr.mxu0 0.0
    %69 = vmatpush1.msra.mxu0 0.0
    %70 = vmatprep.subr.mxu0 0.0
    %71 = vmatpush1.msra.mxu0 0.0
    %72 = vmatprep.subr.mxu0 0.0
    %73 = vmatpush1.msra.mxu0 0.0
    %74 = vmatprep.subr.mxu0 0.0
    %75 = vmatpush1.msra.mxu0 0.0
    %76 = vmatprep.subr.mxu0 0.0
    %77 = vmatpush1.msra.mxu0 0.0
    %78 = vmatprep.subr.mxu0 0.0
    %79 = vmatpush1.msra.mxu0 0.0
    %80 = vmatprep.subr.mxu0 0.0
    %81 = vmatpush1.msra.mxu0 0.0
    %82 = vmatprep.subr.mxu0 0.0
    %83 = vmatpush1.msra.mxu0 0.0
    %84 = vmatprep.subr.mxu0 0.0
    %85 = vmatpush1.msra.mxu0 0.0
    %86 = vmatprep.subr.mxu0 0.0
    %87 = vmatpush1.msra.mxu0 0.0
    %88 = vmatprep.subr.mxu0 0.0
    %89 = vmatpush1.msra.mxu0 0.0
    %90 = vmatprep.subr.mxu0 0.0
    %91 = vmatpush1.msra.mxu0 0.0
    %92 = vmatprep.subr.mxu0 0.0
    %93 = vmatpush1.msra.mxu0 0.0
    %94 = vmatprep.subr.mxu0 0.0
    %95 = vmatpush1.msra.mxu0 0.0
    %96 = vmatprep.subr.mxu0 0.0
    %97 = vmatpush1.msra.mxu0 0.0
    %98 = vmatprep.subr.mxu0 0.0
    %99 = vmatpush1.msra.mxu0 0.0
    %100 = vmatprep.subr.mxu0 0.0
    %101 = vmatpush1.msra.mxu0 0.0
    %102 = vmatprep.subr.mxu0 0.0
    %103 = vmatpush1.msra.mxu0 0.0
    %104 = vmatprep.mubr.f32.mxu0 0.0
    %105 = vmatmul.mubr.f32.gmra.mrb[0].mxu0 %v29
    %v106 = vpop.f32.mrb[0].mxu0
    %v107 = vadd.f32 0.0, %v106
    %v108 = vpop.f32.mrb[0].mxu0
    %109 = vmatprep.mubr.f32.mxu0 0.0
    %110 = vmatmul.mubr.f32.gmra.mrb[0].mxu0 %v32
    %v111 = vpop.f32.mrb[0].mxu0
    %v112 = vadd.f32 0.0, %v111
    %v113 = vpop.f32.mrb[0].mxu0
    %114 = vmatprep.mubr.f32.mxu0 0.0
    %115 = vmatmul.mubr.f32.gmra.mrb[0].mxu0 %v35
    %v116 = vpop.f32.mrb[0].mxu0
    %v117 = vadd.f32 0.0, %v116
    %v118 = vpop.f32.mrb[0].mxu0
    %119 = vmatprep.mubr.f32.mxu0 0.0
    %120 = vmatmul.mubr.f32.gmra.mrb[0].mxu0 %v38
    %v121 = vpop.f32.mrb[0].mxu0
    %v122 = vadd.f32 0.0, %v121
    %v123 = vpop.f32.mrb[0].mxu0
    %124 = vdwg.mxu0
    %v125 = vmul.f32 %v107, %v19
    %v126 = vmul.f32 %v112, %v20
    %v127 = vmul.f32 %v117, %v21
    %v128 = vmul.f32 %v122, %v22
    %vm129 = vcmask 64512
    %v130 = vsel %vm129, %v125, 0.0
    %v131 = vsel %vm129, %v126, 0.0
    %v132 = vadd.f32 %v130, %v131
    %v133 = vsel %vm129, %v127, 0.0
    %v134 = vadd.f32 %v132, %v133
    %v135 = vsel %vm129, %v128, 0.0
    %v136 = vadd.f32 %v134, %v135
    %v137 = vrot.slane %v136, 4
    %v138 = vadd.f32 %v136, %v137
    %v139 = vrot.slane %v138, 2
    %v140 = vadd.f32 %v138, %v139
    %v141 = vrot.slane %v140, 1
    %v142 = vadd.f32 %v140, %v141
    %v143 = vxor.u32 %v142, 2147483648
    %v144 = vmul.f32 %v143, 1.442695
    %v145 = vpow.pop %v144
    %v146 = vadd.f32 %v145, 1.0
    %v147 = vrcp.pop %v146
    %v148 = vmul.f32 1.0, %v147
    %vm149 = vcmask 57344
    %150 = vst.msk [vmem:[#allocation2] sm:$0x1] %vm149, %v148
    %s151 = scalar_lea.vmem %s2, 32
    %v152 = vld [vmem:[%s151] sm:$0xff]
    %v153 = vld [vmem:[%s151 + $0x8] sm:$0xff]
    %v154 = vld [vmem:[%s151 + $0x10] sm:$0xff]
    %v155 = vld [vmem:[%s151 + $0x18] sm:$0xff]
    %v157 = vsel %vm27, %v152, 0
    %v160 = vsel %vm27, %v153, 0
    %v163 = vsel %vm27, %v154, 0
    %v166 = vsel %vm27, %v155, 0
    %168 = vmatprep.subr.mxu0 0.0
    %169 = vmatpush1.msra.mxu0 %v15
    %170 = vmatprep.subr.mxu0 0.0
    %171 = vmatpush1.msra.mxu0 %v16
    %172 = vmatprep.subr.mxu0 0.0
    %173 = vmatpush1.msra.mxu0 %v17
    %174 = vmatprep.subr.mxu0 0.0
    %175 = vmatpush1.msra.mxu0 %v18
    %176 = vmatprep.subr.mxu0 0.0
    %177 = vmatpush1.msra.mxu0 0.0
    %178 = vmatprep.subr.mxu0 0.0
    %179 = vmatpush1.msra.mxu0 0.0
    %180 = vmatprep.subr.mxu0 0.0
    %181 = vmatpush1.msra.mxu0 0.0
    %182 = vmatprep.subr.mxu0 0.0
    %183 = vmatpush1.msra.mxu0 0.0
    %184 = vmatprep.subr.mxu0 0.0
    %185 = vmatpush1.msra.mxu0 0.0
    %186 = vmatprep.subr.mxu0 0.0
    %187 = vmatpush1.msra.mxu0 0.0
    %188 = vmatprep.subr.mxu0 0.0
    %189 = vmatpush1.msra.mxu0 0.0
    %190 = vmatprep.subr.mxu0 0.0
    %191 = vmatpush1.msra.mxu0 0.0
    %192 = vmatprep.subr.mxu0 0.0
    %193 = vmatpush1.msra.mxu0 0.0
    %194 = vmatprep.subr.mxu0 0.0
    %195 = vmatpush1.msra.mxu0 0.0
    %196 = vmatprep.subr.mxu0 0.0
    %197 = vmatpush1.msra.mxu0 0.0
    %198 = vmatprep.subr.mxu0 0.0
    %199 = vmatpush1.msra.mxu0 0.0
    %200 = vmatprep.subr.mxu0 0.0
    %201 = vmatpush1.msra.mxu0 0.0
    %202 = vmatprep.subr.mxu0 0.0
    %203 = vmatpush1.msra.mxu0 0.0
    %204 = vmatprep.subr.mxu0 0.0
    %205 = vmatpush1.msra.mxu0 0.0
    %206 = vmatprep.subr.mxu0 0.0
    %207 = vmatpush1.msra.mxu0 0.0
    %208 = vmatprep.subr.mxu0 0.0
    %209 = vmatpush1.msra.mxu0 0.0
    %210 = vmatprep.subr.mxu0 0.0
    %211 = vmatpush1.msra.mxu0 0.0
    %212 = vmatprep.subr.mxu0 0.0
    %213 = vmatpush1.msra.mxu0 0.0
    %214 = vmatprep.subr.mxu0 0.0
    %215 = vmatpush1.msra.mxu0 0.0
    %216 = vmatprep.subr.mxu0 0.0
    %217 = vmatpush1.msra.mxu0 0.0
    %218 = vmatprep.subr.mxu0 0.0
    %219 = vmatpush1.msra.mxu0 0.0
    %220 = vmatprep.subr.mxu0 0.0
    %221 = vmatpush1.msra.mxu0 0.0
    %222 = vmatprep.subr.mxu0 0.0
    %223 = vmatpush1.msra.mxu0 0.0
    %224 = vmatprep.subr.mxu0 0.0
    %225 = vmatpush1.msra.mxu0 0.0
    %226 = vmatprep.subr.mxu0 0.0
    %227 = vmatpush1.msra.mxu0 0.0
    %228 = vmatprep.subr.mxu0 0.0
    %229 = vmatpush1.msra.mxu0 0.0
    %230 = vmatprep.subr.mxu0 0.0
    %231 = vmatpush1.msra.mxu0 0.0
    %232 = vmatprep.mubr.f32.mxu0 0.0
    %233 = vmatmul.mubr.f32.gmra.mrb[0].mxu0 %v157
    %v234 = vpop.f32.mrb[0].mxu0
    %v235 = vadd.f32 0.0, %v234
    %v236 = vpop.f32.mrb[0].mxu0
    %237 = vmatprep.mubr.f32.mxu0 0.0
    %238 = vmatmul.mubr.f32.gmra.mrb[0].mxu0 %v160
    %v239 = vpop.f32.mrb[0].mxu0
    %v240 = vadd.f32 0.0, %v239
    %v241 = vpop.f32.mrb[0].mxu0
    %242 = vmatprep.mubr.f32.mxu0 0.0
    %243 = vmatmul.mubr.f32.gmra.mrb[0].mxu0 %v163
    %v244 = vpop.f32.mrb[0].mxu0
    %v245 = vadd.f32 0.0, %v244
    %v246 = vpop.f32.mrb[0].mxu0
    %247 = vmatprep.mubr.f32.mxu0 0.0
    %248 = vmatmul.mubr.f32.gmra.mrb[0].mxu0 %v166
    %v249 = vpop.f32.mrb[0].mxu0
    %v250 = vadd.f32 0.0, %v249
    %v251 = vpop.f32.mrb[0].mxu0
    %252 = vdwg.mxu0
    %v253 = vmul.f32 %v235, %v19
    %v254 = vmul.f32 %v240, %v20
    %v255 = vmul.f32 %v245, %v21
    %v256 = vmul.f32 %v250, %v22
    %v257 = vsel %vm129, %v253, 0.0
    %v258 = vsel %vm129, %v254, 0.0
    %v259 = vadd.f32 %v257, %v258
    %v260 = vsel %vm129, %v255, 0.0
    %v261 = vadd.f32 %v259, %v260
    %v262 = vsel %vm129, %v256, 0.0
    %v263 = vadd.f32 %v261, %v262
    %v264 = vrot.slane %v263, 4
    %v265 = vadd.f32 %v263, %v264
    %v266 = vrot.slane %v265, 2
    %v267 = vadd.f32 %v265, %v266
    %v268 = vrot.slane %v267, 1
    %v269 = vadd.f32 %v267, %v268
    %v270 = vxor.u32 %v269, 2147483648
    %v271 = vmul.f32 %v270, 1.442695
    %v272 = vpow.pop %v271
    %v273 = vadd.f32 %v272, 1.0
    %v274 = vrcp.pop %v273
    %v275 = vmul.f32 1.0, %v274
    %276 = vst.msk [vmem:[#allocation2 + $0x1] sm:$0x1] %vm149, %v275
    %s277 = scalar_lea.vmem %s2, 64
    %v278 = vld [vmem:[%s277] sm:$0xff]
    %v279 = vld [vmem:[%s277 + $0x8] sm:$0xff]
    %v280 = vld [vmem:[%s277 + $0x10] sm:$0xff]
    %v281 = vld [vmem:[%s277 + $0x18] sm:$0xff]
    %v283 = vsel %vm27, %v278, 0
    %v286 = vsel %vm27, %v279, 0
    %v289 = vsel %vm27, %v280, 0
    %v292 = vsel %vm27, %v281, 0
    %294 = vmatprep.subr.mxu0 0.0
    %295 = vmatpush1.msra.mxu0 %v15
    %296 = vmatprep.subr.mxu0 0.0
    %297 = vmatpush1.msra.mxu0 %v16
    %298 = vmatprep.subr.mxu0 0.0
    %299 = vmatpush1.msra.mxu0 %v17
    %300 = vmatprep.subr.mxu0 0.0
    %301 = vmatpush1.msra.mxu0 %v18
    %302 = vmatprep.subr.mxu0 0.0
    %303 = vmatpush1.msra.mxu0 0.0
    %304 = vmatprep.subr.mxu0 0.0
    %305 = vmatpush1.msra.mxu0 0.0
    %306 = vmatprep.subr.mxu0 0.0
    %307 = vmatpush1.msra.mxu0 0.0
    %308 = vmatprep.subr.mxu0 0.0
    %309 = vmatpush1.msra.mxu0 0.0
    %310 = vmatprep.subr.mxu0 0.0
    %311 = vmatpush1.msra.mxu0 0.0
    %312 = vmatprep.subr.mxu0 0.0
    %313 = vmatpush1.msra.mxu0 0.0
    %314 = vmatprep.subr.mxu0 0.0
    %315 = vmatpush1.msra.mxu0 0.0
    %316 = vmatprep.subr.mxu0 0.0
    %317 = vmatpush1.msra.mxu0 0.0
    %318 = vmatprep.subr.mxu0 0.0
    %319 = vmatpush1.msra.mxu0 0.0
    %320 = vmatprep.subr.mxu0 0.0
    %321 = vmatpush1.msra.mxu0 0.0
    %322 = vmatprep.subr.mxu0 0.0
    %323 = vmatpush1.msra.mxu0 0.0
    %324 = vmatprep.subr.mxu0 0.0
    %325 = vmatpush1.msra.mxu0 0.0
    %326 = vmatprep.subr.mxu0 0.0
    %327 = vmatpush1.msra.mxu0 0.0
    %328 = vmatprep.subr.mxu0 0.0
    %329 = vmatpush1.msra.mxu0 0.0
    %330 = vmatprep.subr.mxu0 0.0
    %331 = vmatpush1.msra.mxu0 0.0
    %332 = vmatprep.subr.mxu0 0.0
    %333 = vmatpush1.msra.mxu0 0.0
    %334 = vmatprep.subr.mxu0 0.0
    %335 = vmatpush1.msra.mxu0 0.0
    %336 = vmatprep.subr.mxu0 0.0
    %337 = vmatpush1.msra.mxu0 0.0
    %338 = vmatprep.subr.mxu0 0.0
    %339 = vmatpush1.msra.mxu0 0.0
    %340 = vmatprep.subr.mxu0 0.0
    %341 = vmatpush1.msra.mxu0 0.0
    %342 = vmatprep.subr.mxu0 0.0
    %343 = vmatpush1.msra.mxu0 0.0
    %344 = vmatprep.subr.mxu0 0.0
    %345 = vmatpush1.msra.mxu0 0.0
    %346 = vmatprep.subr.mxu0 0.0
    %347 = vmatpush1.msra.mxu0 0.0
    %348 = vmatprep.subr.mxu0 0.0
    %349 = vmatpush1.msra.mxu0 0.0
    %350 = vmatprep.subr.mxu0 0.0
    %351 = vmatpush1.msra.mxu0 0.0
    %352 = vmatprep.subr.mxu0 0.0
    %353 = vmatpush1.msra.mxu0 0.0
    %354 = vmatprep.subr.mxu0 0.0
    %355 = vmatpush1.msra.mxu0 0.0
    %356 = vmatprep.subr.mxu0 0.0
    %357 = vmatpush1.msra.mxu0 0.0
    %358 = vmatprep.mubr.f32.mxu0 0.0
    %359 = vmatmul.mubr.f32.gmra.mrb[0].mxu0 %v283
    %v360 = vpop.f32.mrb[0].mxu0
    %v361 = vadd.f32 0.0, %v360
    %v362 = vpop.f32.mrb[0].mxu0
    %363 = vmatprep.mubr.f32.mxu0 0.0
    %364 = vmatmul.mubr.f32.gmra.mrb[0].mxu0 %v286
    %v365 = vpop.f32.mrb[0].mxu0
    %v366 = vadd.f32 0.0, %v365
    %v367 = vpop.f32.mrb[0].mxu0
    %368 = vmatprep.mubr.f32.mxu0 0.0
    %369 = vmatmul.mubr.f32.gmra.mrb[0].mxu0 %v289
    %v370 = vpop.f32.mrb[0].mxu0
    %v371 = vadd.f32 0.0, %v370
    %v372 = vpop.f32.mrb[0].mxu0
    %373 = vmatprep.mubr.f32.mxu0 0.0
    %374 = vmatmul.mubr.f32.gmra.mrb[0].mxu0 %v292
    %v375 = vpop.f32.mrb[0].mxu0
    %v376 = vadd.f32 0.0, %v375
    %v377 = vpop.f32.mrb[0].mxu0
    %378 = vdwg.mxu0
    %v379 = vmul.f32 %v361, %v19
    %v380 = vmul.f32 %v366, %v20
    %v381 = vmul.f32 %v371, %v21
    %v382 = vmul.f32 %v376, %v22
    %v383 = vsel %vm129, %v379, 0.0
    %v384 = vsel %vm129, %v380, 0.0
    %v385 = vadd.f32 %v383, %v384
    %v386 = vsel %vm129, %v381, 0.0
    %v387 = vadd.f32 %v385, %v386
    %v388 = vsel %vm129, %v382, 0.0
    %v389 = vadd.f32 %v387, %v388
    %v390 = vrot.slane %v389, 4
    %v391 = vadd.f32 %v389, %v390
    %v392 = vrot.slane %v391, 2
    %v393 = vadd.f32 %v391, %v392
    %v394 = vrot.slane %v393, 1
    %v395 = vadd.f32 %v393, %v394
    %v396 = vxor.u32 %v395, 2147483648
    %v397 = vmul.f32 %v396, 1.442695
    %v398 = vpow.pop %v397
    %v399 = vadd.f32 %v398, 1.0
    %v400 = vrcp.pop %v399
    %v401 = vmul.f32 1.0, %v400
    %402 = vst.msk [vmem:[#allocation2 + $0x2] sm:$0x1] %vm149, %v401
    %s403 = scalar_lea.vmem %s2, 96
    %v404 = vld [vmem:[%s403] sm:$0xff]
    %v405 = vld [vmem:[%s403 + $0x8] sm:$0xff]
    %v406 = vld [vmem:[%s403 + $0x10] sm:$0xff]
    %v407 = vld [vmem:[%s403 + $0x18] sm:$0xff]
    %v409 = vsel %vm27, %v404, 0
    %v412 = vsel %vm27, %v405, 0
    %v415 = vsel %vm27, %v406, 0
    %v418 = vsel %vm27, %v407, 0
    %420 = vmatprep.subr.mxu0 0.0
    %421 = vmatpush1.msra.mxu0 %v15
    %422 = vmatprep.subr.mxu0 0.0
    %423 = vmatpush1.msra.mxu0 %v16
    %424 = vmatprep.subr.mxu0 0.0
    %425 = vmatpush1.msra.mxu0 %v17
    %426 = vmatprep.subr.mxu0 0.0
    %427 = vmatpush1.msra.mxu0 %v18
    %428 = vmatprep.subr.mxu0 0.0
    %429 = vmatpush1.msra.mxu0 0.0
    %430 = vmatprep.subr.mxu0 0.0
    %431 = vmatpush1.msra.mxu0 0.0
    %432 = vmatprep.subr.mxu0 0.0
    %433 = vmatpush1.msra.mxu0 0.0
    %434 = vmatprep.subr.mxu0 0.0
    %435 = vmatpush1.msra.mxu0 0.0
    %436 = vmatprep.subr.mxu0 0.0
    %437 = vmatpush1.msra.mxu0 0.0
    %438 = vmatprep.subr.mxu0 0.0
    %439 = vmatpush1.msra.mxu0 0.0
    %440 = vmatprep.subr.mxu0 0.0
    %441 = vmatpush1.msra.mxu0 0.0
    %442 = vmatprep.subr.mxu0 0.0
    %443 = vmatpush1.msra.mxu0 0.0
    %444 = vmatprep.subr.mxu0 0.0
    %445 = vmatpush1.msra.mxu0 0.0
    %446 = vmatprep.subr.mxu0 0.0
    %447 = vmatpush1.msra.mxu0 0.0
    %448 = vmatprep.subr.mxu0 0.0
    %449 = vmatpush1.msra.mxu0 0.0
    %450 = vmatprep.subr.mxu0 0.0
    %451 = vmatpush1.msra.mxu0 0.0
    %452 = vmatprep.subr.mxu0 0.0
    %453 = vmatpush1.msra.mxu0 0.0
    %454 = vmatprep.subr.mxu0 0.0
    %455 = vmatpush1.msra.mxu0 0.0
    %456 = vmatprep.subr.mxu0 0.0
    %457 = vmatpush1.msra.mxu0 0.0
    %458 = vmatprep.subr.mxu0 0.0
    %459 = vmatpush1.msra.mxu0 0.0
    %460 = vmatprep.subr.mxu0 0.0
    %461 = vmatpush1.msra.mxu0 0.0
    %462 = vmatprep.subr.mxu0 0.0
    %463 = vmatpush1.msra.mxu0 0.0
    %464 = vmatprep.subr.mxu0 0.0
    %465 = vmatpush1.msra.mxu0 0.0
    %466 = vmatprep.subr.mxu0 0.0
    %467 = vmatpush1.msra.mxu0 0.0
    %468 = vmatprep.subr.mxu0 0.0
    %469 = vmatpush1.msra.mxu0 0.0
    %470 = vmatprep.subr.mxu0 0.0
    %471 = vmatpush1.msra.mxu0 0.0
    %472 = vmatprep.subr.mxu0 0.0
    %473 = vmatpush1.msra.mxu0 0.0
    %474 = vmatprep.subr.mxu0 0.0
    %475 = vmatpush1.msra.mxu0 0.0
    %476 = vmatprep.subr.mxu0 0.0
    %477 = vmatpush1.msra.mxu0 0.0
    %478 = vmatprep.subr.mxu0 0.0
    %479 = vmatpush1.msra.mxu0 0.0
    %480 = vmatprep.subr.mxu0 0.0
    %481 = vmatpush1.msra.mxu0 0.0
    %482 = vmatprep.subr.mxu0 0.0
    %483 = vmatpush1.msra.mxu0 0.0
    %484 = vmatprep.mubr.f32.mxu0 0.0
    %485 = vmatmul.mubr.f32.gmra.mrb[0].mxu0 %v409
    %v486 = vpop.f32.mrb[0].mxu0
    %v487 = vadd.f32 0.0, %v486
    %v488 = vpop.f32.mrb[0].mxu0
    %489 = vmatprep.mubr.f32.mxu0 0.0
    %490 = vmatmul.mubr.f32.gmra.mrb[0].mxu0 %v412
    %v491 = vpop.f32.mrb[0].mxu0
    %v492 = vadd.f32 0.0, %v491
    %v493 = vpop.f32.mrb[0].mxu0
    %494 = vmatprep.mubr.f32.mxu0 0.0
    %495 = vmatmul.mubr.f32.gmra.mrb[0].mxu0 %v415
    %v496 = vpop.f32.mrb[0].mxu0
    %v497 = vadd.f32 0.0, %v496
    %v498 = vpop.f32.mrb[0].mxu0
    %499 = vmatprep.mubr.f32.mxu0 0.0
    %500 = vmatmul.mubr.f32.gmra.mrb[0].mxu0 %v418
    %v501 = vpop.f32.mrb[0].mxu0
    %v502 = vadd.f32 0.0, %v501
    %v503 = vpop.f32.mrb[0].mxu0
    %504 = vdwg.mxu0
    %v505 = vmul.f32 %v487, %v19
    %v506 = vmul.f32 %v492, %v20
    %v507 = vmul.f32 %v497, %v21
    %v508 = vmul.f32 %v502, %v22
    %v509 = vsel %vm129, %v505, 0.0
    %v510 = vsel %vm129, %v506, 0.0
    %v511 = vadd.f32 %v509, %v510
    %v512 = vsel %vm129, %v507, 0.0
    %v513 = vadd.f32 %v511, %v512
    %v514 = vsel %vm129, %v508, 0.0
    %v515 = vadd.f32 %v513, %v514
    %v516 = vrot.slane %v515, 4
    %v517 = vadd.f32 %v515, %v516
    %v518 = vrot.slane %v517, 2
    %v519 = vadd.f32 %v517, %v518
    %v520 = vrot.slane %v519, 1
    %v521 = vadd.f32 %v519, %v520
    %v522 = vxor.u32 %v521, 2147483648
    %v523 = vmul.f32 %v522, 1.442695
    %v524 = vpow.pop %v523
    %v525 = vadd.f32 %v524, 1.0
    %v526 = vrcp.pop %v525
    %v527 = vmul.f32 1.0, %v526
    %528 = vst.msk [vmem:[#allocation2 + $0x3] sm:$0x1] %vm149, %v527
    // Predicated region
    $region14: #{ddi_decagon_forward.5} parent=1 // pred_check
      _
    $region15: #{ddi_decagon_forward.5} parent=1 // pred_check_branch
      %530 = sbr.rel (0) target = $region17
    $region16: #{ddi_decagon_forward.5} parent=1 // pred_region
      %s532 = ssub.s32 64, 64
      %533 = vsyncadd [#allocation3], %s532
      %s535 = sshll.u32 [#allocation2], 4
      %s536 = int_to_ptr.vmem [resolvable:$true] %s535
      %538 = dma.vmem_to_hbm [thread:$0]  %s536, 64, %s3, [#allocation3]
    $region17: #{ddi_decagon_forward.5} parent=1 // pred_fallthru
      _
    // Predicated region
    $region18: #{ddi_decagon_forward.5} parent=1 // pred_check
      _
    $region19: #{ddi_decagon_forward.5} parent=1 // pred_check_branch
      %540 = sbr.rel (0) target = $region21
    $region20: #{ddi_decagon_forward.5} parent=1 // pred_region
      %541 = dma.done [#allocation3], 64
    $region21: #{ddi_decagon_forward.5} parent=1 // pred_fallthru
      _
    %542 = vsyncpa [#allocation3], 1

</llo_original>
